<compile_context>
chip_gen: v7x
topology: tpu7x:2x2x1
jax: 0.10.0
libtpu: 0.0.40
codegen_flags: <defaults>
</compile_context>

<pallas_src>
import jax
import jax.numpy as jnp
import numpy as np
from jax.experimental import pallas as pl
from jax.experimental.pallas import tpu as pltpu


# Conservative VMEM budget used for tile sizing (v7x has 64 MiB physical VMEM,
# 32 MiB scoped default; leave headroom for double-buffered pipelines).
_VMEM_BUDGET_BYTES = 40 * 1024 * 1024


def _round_up(x, m):
    return ((x + m - 1) // m) * m


def _choose_tile_m(m_rows, f, d_pad, itemsize):
    """Pick a row-tile size: 256 (v6e/v7x MXU width), capped by M and VMEM."""
    tile_m = min(256, _round_up(m_rows, 8))

    def vmem_estimate(tm):
        # 2x buffered x/pe/out tiles + 2x buffered (grid-invariant) weight.
        return itemsize * (2 * tm * (f + 2 * d_pad) + 2 * f * d_pad)

    while tile_m > 8 and vmem_estimate(tile_m) > _VMEM_BUDGET_BYTES:
        tile_m = max(8, tile_m // 2)
    return tile_m


def _embedding_patches_kernel(x_ref, w_ref, pe_ref, o_ref):
    # x_ref : (TILE_M, F)      row tile of flattened patches
    # w_ref : (F, D_pad)       grid-invariant projection weight (bias folded away)
    # pe_ref: (TILE_M, D_pad)  positional embedding + bias, aligned with x rows
    # o_ref : (TILE_M, D_pad)  lane-dense output tile
    proj = jnp.dot(x_ref[...], w_ref[...], preferred_element_type=jnp.float32)
    o_ref[...] = (proj + pe_ref[...]).astype(o_ref.dtype)


def embedding_patches(inp, weight, bias, pe, *, tile_m=None):
    """inp: (B, N, F), weight: (F, D), bias: (D,), pe: (N, D) -> (B, N, D).

    tile_m: rows per grid step. Default heuristic is 256 (v6e/v7x); pass 128 on
    v5e (4x128 MXU). On v5e you may also pass bf16 inp/weight to halve HBM reads
    (accumulation stays f32).
    """
    B, N, F = inp.shape
    D = weight.shape[1]
    dtype = inp.dtype
    itemsize = jnp.dtype(dtype).itemsize

    M = B * N
    D_pad = _round_up(D, 128)  # lane-dense output stores

    if tile_m is None:
        tile_m = _choose_tile_m(M, F, D_pad, itemsize)
    tile_m = max(8, _round_up(tile_m, 8))
    M_pad = _round_up(M, tile_m)

    # Fold bias into pe and broadcast it per flattened row -> one aligned VPU add
    # in the kernel, no gather, one fewer kernel operand.
    pe_rows = (pe.astype(jnp.float32) + bias.astype(jnp.float32)[None, :])
    pe_rows = jnp.broadcast_to(pe_rows[None], (B, N, D)).reshape(M, D).astype(dtype)

    x2 = inp.reshape(M, F)
    w = weight.astype(dtype)
    if M_pad != M:
        x2 = jnp.pad(x2, ((0, M_pad - M), (0, 0)))
        pe_rows = jnp.pad(pe_rows, ((0, M_pad - M), (0, 0)))
    if D_pad != D:
        w = jnp.pad(w, ((0, 0), (0, D_pad - D)))
        pe_rows = jnp.pad(pe_rows, ((0, 0), (0, D_pad - D)))

    grid = (M_pad // tile_m,)

    out = pl.pallas_call(
        _embedding_patches_kernel,
        out_shape=jax.ShapeDtypeStruct((M_pad, D_pad), dtype),
        grid_spec=pltpu.PrefetchScalarGridSpec(
            num_scalar_prefetch=0,
            grid=grid,
            in_specs=[
                pl.BlockSpec((tile_m, F), lambda i: (i, 0)),       # x row tile
                pl.BlockSpec((F, D_pad), lambda i: (0, 0)),        # weight (grid-invariant)
                pl.BlockSpec((tile_m, D_pad), lambda i: (i, 0)),   # pe+bias rows
            ],
            out_specs=pl.BlockSpec((tile_m, D_pad), lambda i: (i, 0)),
        ),
        compiler_params=pltpu.CompilerParams(
            dimension_semantics=("parallel",),          # independent row tiles (2 TCs on v7x)
            vmem_limit_bytes=48 * 1024 * 1024,          # explicit: safe on v5e/v6e/v7x
        ),
        cost_estimate=pl.CostEstimate(
            flops=2 * M * F * D,
            transcendentals=0,
            bytes_accessed=itemsize * (M * F + F * D_pad + M_pad * D_pad + M_pad * D_pad),
        ),
    )(x2, w, pe_rows)

    if M_pad != M or D_pad != D:
        out = out[:M, :D]
    return out.reshape(B, N, D)


def init_positional_embeddings(max_model_len, d_emb):
    """Standard sinusoidal positional embeddings, shape (max_model_len, d_emb)."""
    pos = np.arange(max_model_len, dtype=np.float32)[:, None]          # (N, 1)
    i = np.arange(d_emb, dtype=np.float32)[None, :]                    # (1, D)
    angle_rates = 1.0 / np.power(10000.0, (2.0 * np.floor(i / 2.0)) / d_emb)
    angles = pos * angle_rates                                         # (N, D)
    pe = np.zeros((max_model_len, d_emb), dtype=np.float32)
    pe[:, 0::2] = np.sin(angles[:, 0::2])
    pe[:, 1::2] = np.cos(angles[:, 1::2])
    # The PyTorch module stores init_positional_embeddings(...).T; that transpose
    # convention nets out to a (num_patches, hidden_size) tensor that broadcasts
    # over batch, which is what we return here.
    return jnp.asarray(pe)


def reference(inp, weight, bias, pe):
    return jnp.einsum("bnf,fd->bnd", inp, weight) + bias[None, None, :] + pe[None, :, :]


if __name__ == "__main__":
    # Small, consistent shapes: patch_size=4 -> F = 4*4*3 = 48,
    # hidden_size D = 32, num_patches N = 16, batch B = 2.
    patch_size = 4
    hidden_size = 32
    num_patches = 16
    batch = 2
    flatten_patch_size = patch_size * patch_size * 3  # 48

    key = jax.random.PRNGKey(0)
    k_x, k_w, k_b = jax.random.split(key, 3)

    inp = jax.random.normal(k_x, (batch, num_patches, flatten_patch_size),
                            dtype=jnp.float32)
    # Deterministic "Linear" params (torch Linear would be (D, F); we store (F, D)).
    bound = 1.0 / np.sqrt(flatten_patch_size)
    weight = jax.random.uniform(k_w, (flatten_patch_size, hidden_size),
                                minval=-bound, maxval=bound, dtype=jnp.float32)
    bias = jax.random.uniform(k_b, (hidden_size,),
                              minval=-bound, maxval=bound, dtype=jnp.float32)
    pe = init_positional_embeddings(max_model_len=num_patches, d_emb=hidden_size)

    out = embedding_patches(inp, weight, bias, pe)
    out = jax.block_until_ready(out)

    ref = reference(inp, weight, bias, pe)
    np.testing.assert_allclose(np.asarray(out), np.asarray(ref),
                               rtol=1e-5, atol=1e-5)
    print("KERNEL_OK")
</pallas_src>

<mosaic_0001>
module attributes {stable_mosaic.version = 11 : i64} {
  func.func @_embedding_patches_kernel(%arg0: i32, %arg1: memref<32x48xf32, #tpu.memory_space<vmem>>, %arg2: memref<48x128xf32, #tpu.memory_space<vmem>>, %arg3: memref<32x128xf32, #tpu.memory_space<vmem>>, %arg4: memref<32x128xf32, #tpu.memory_space<vmem>>) attributes {dimension_semantics = [#tpu.dimension_semantics<parallel>], iteration_bounds = array<i64: 1>, scalar_prefetch = 0 : i64, scratch_operands = 0 : i64, tpu.core_type = #tpu.core_type<tc>, window_params = [{transform_indices = @transform_0, window_bounds = array<i64: 32, 48>}, {pipeline_mode = #tpu.pipeline_mode<synchronous>, transform_indices = @transform_1, window_bounds = array<i64: 48, 128>}, {transform_indices = @transform_2, window_bounds = array<i64: 32, 128>}, {transform_indices = @transform_3, window_bounds = array<i64: 32, 128>}]} {
    %c0 = arith.constant 0 : index
    %c0_0 = arith.constant 0 : index
    %0 = vector.load %arg1[%c0, %c0_0] : memref<32x48xf32, #tpu.memory_space<vmem>>, vector<32x48xf32>
    %c0_1 = arith.constant 0 : index
    %c0_2 = arith.constant 0 : index
    %1 = vector.load %arg2[%c0_1, %c0_2] : memref<48x128xf32, #tpu.memory_space<vmem>>, vector<48x128xf32>
    %cst = arith.constant dense<0.000000e+00> : vector<32x128xf32>
    %2 = tpu.matmul %0, %1, %cst {dimension_numbers = #tpu.dot_dimension_numbers<[1], [0], [0], [1], [0, 0, 1, 1], [], []>} : vector<32x48xf32>, vector<48x128xf32>, vector<32x128xf32> -> vector<32x128xf32>
    %c0_3 = arith.constant 0 : index
    %c0_4 = arith.constant 0 : index
    %3 = vector.load %arg3[%c0_3, %c0_4] : memref<32x128xf32, #tpu.memory_space<vmem>>, vector<32x128xf32>
    %4 = arith.addf %2, %3 : vector<32x128xf32>
    %c0_5 = arith.constant 0 : index
    %c0_6 = arith.constant 0 : index
    %5 = vector.load %arg4[%c0_5, %c0_6] : memref<32x128xf32, #tpu.memory_space<vmem>>, vector<32x128xf32>
    tpu.vector_store %arg4[%c0_5, %c0_6], %4 {strides = array<i32>} : memref<32x128xf32, #tpu.memory_space<vmem>>, vector<32x128xf32>,
    return
  }
  func.func @transform_0(%arg0: i32) -> (i32, i32) {
    %c0_i32 = arith.constant 0 : i32
    %c0_i32_0 = arith.constant 0 : i32
    return %arg0, %c0_i32 : i32, i32
  }
  func.func @transform_1(%arg0: i32) -> (i32, i32) {
    %c0_i32 = arith.constant 0 : i32
    %c0_i32_0 = arith.constant 0 : i32
    %c0_i32_1 = arith.constant 0 : i32
    return %c0_i32, %c0_i32_0 : i32, i32
  }
  func.func @transform_2(%arg0: i32) -> (i32, i32) {
    %c0_i32 = arith.constant 0 : i32
    %c0_i32_0 = arith.constant 0 : i32
    return %arg0, %c0_i32 : i32, i32
  }
  func.func @transform_3(%arg0: i32) -> (i32, i32) {
    %c0_i32 = arith.constant 0 : i32
    %c0_i32_0 = arith.constant 0 : i32
    return %arg0, %c0_i32 : i32, i32
  }
}

</mosaic_0001>

<llo_original>
// kernel: tpu_custom_call.1
$region0: #{tpu_custom_call.1}
  #allocation0 [shape = 'u32[]', space=smem, size = 0x4, offset = 0x4, fixed_abs, tag = 'smem constant byte address 0x4 - core index']
  #allocation1 [shape = 'u32[144,128]{1,0:T(1,128)}', space=vmem, size = 0x12000, scoped, tag = 'internal scratch']
  %s0 = inlined_call_operand.hbm [shape: f32[32,48], index: 0, kind: input, shape index: {}]
  %s1 = inlined_call_operand.hbm [shape: f32[48,128], index: 1, kind: input, shape index: {}]
  %s2 = inlined_call_operand.hbm [shape: f32[32,128], index: 2, kind: input, shape index: {}]
  %s3 = inlined_call_operand.hbm [shape: f32[32,128], index: 3, kind: output, shape index: {}]
  %s4 = sld [smem:[#allocation0]]
  $region34: #{tpu_custom_call.1} parent=0
    _
  %s6 = ssub.s32 1, %s4
  %s7 = scalar_select 0, %s6, %s4
  $region1: #{tpu_custom_call.1} parent=0
    #allocation2 [shape = 'u8[16384]{0}', space=vmem, size = 0x4000, scoped, tag = 'input window, operand 0, single buffered']
    #allocation3 [shape = 's32[1]{0}', space=sflag, size = 0x4, scoped, tag = 'scoped memory for tpu_custom_call.1']
    #allocation4 [shape = 's32[1]{0}', space=sflag, size = 0x4, scoped, tag = 'scoped memory for tpu_custom_call.1']
    #allocation5 [shape = 'u8[24576]{0}', space=vmem, size = 0x6000, scoped, tag = 'input window, operand 1, single buffered']
    #allocation6 [shape = 's32[1]{0}', space=sflag, size = 0x4, scoped, tag = 'scoped memory for tpu_custom_call.1']
    #allocation7 [shape = 'u8[16384]{0}', space=vmem, size = 0x4000, scoped, tag = 'input window, operand 2, single buffered']
    #allocation8 [shape = 'u8[16384]{0}', space=vmem, size = 0x4000, scoped, tag = 'output window, operand 0, single buffered']
    %8 = vsyncpa [#allocation3], 0
    %9 = vsyncpa [#allocation6], 0
    %10 = vsyncpa [#allocation4], 0
    // Predicated region
    $region2: #{tpu_custom_call.1} parent=1 // pred_check
      _
    $region3: #{tpu_custom_call.1} parent=1 // pred_check_branch
      %12 = sbr.rel (0) target = $region5
    $region4: #{tpu_custom_call.1} parent=1 // pred_region
      %s14 = ssub.s32 512, 512
      %15 = vsyncadd [#allocation3], %s14
      %s16 = sshll.u32 [#allocation2], 4
      %s17 = int_to_ptr.vmem [resolvable:$true] %s16
      %22 = dma.hbm_to_vmem [thread:$0]  %s0, 512, %s17, [#allocation3], 128, 128, 8
    $region5: #{tpu_custom_call.1} parent=1 // pred_fallthru
      _
    // Predicated region
    $region6: #{tpu_custom_call.1} parent=1 // pred_check
      _
    $region7: #{tpu_custom_call.1} parent=1 // pred_check_branch
      %24 = sbr.rel (0) target = $region9
    $region8: #{tpu_custom_call.1} parent=1 // pred_region
      %s26 = ssub.s32 768, 768
      %27 = vsyncadd [#allocation6], %s26
      %s28 = sshll.u32 [#allocation5], 4
      %s29 = int_to_ptr.vmem [resolvable:$true] %s28
      %34 = dma.hbm_to_vmem [thread:$0]  %s1, 768, %s29, [#allocation6], 128, 128, 8
    $region9: #{tpu_custom_call.1} parent=1 // pred_fallthru
      _
    // Predicated region
    $region10: #{tpu_custom_call.1} parent=1 // pred_check
      _
    $region11: #{tpu_custom_call.1} parent=1 // pred_check_branch
      %36 = sbr.rel (0) target = $region13
    $region12: #{tpu_custom_call.1} parent=1 // pred_region
      %s38 = ssub.s32 512, 512
      %39 = vsyncadd [#allocation6], %s38
      %s40 = sshll.u32 [#allocation7], 4
      %s41 = int_to_ptr.vmem [resolvable:$true] %s40
      %46 = dma.hbm_to_vmem [thread:$0]  %s2, 512, %s41, [#allocation6], 128, 128, 8
    $region13: #{tpu_custom_call.1} parent=1 // pred_fallthru
      _
    // Predicated region
    $region14: #{tpu_custom_call.1} parent=1 // pred_check
      _
    $region15: #{tpu_custom_call.1} parent=1 // pred_check_branch
      %48 = sbr.rel (0) target = $region17
    $region16: #{tpu_custom_call.1} parent=1 // pred_region
      %49 = dma.done [#allocation3], 512
    $region17: #{tpu_custom_call.1} parent=1 // pred_fallthru
      _
    // Predicated region
    $region18: #{tpu_custom_call.1} parent=1 // pred_check
      _
    $region19: #{tpu_custom_call.1} parent=1 // pred_check_branch
      %51 = sbr.rel (0) target = $region21
    $region20: #{tpu_custom_call.1} parent=1 // pred_region
      %52 = dma.done [#allocation6], 768
    $region21: #{tpu_custom_call.1} parent=1 // pred_fallthru
      _
    // Predicated region
    $region22: #{tpu_custom_call.1} parent=1 // pred_check
      _
    $region23: #{tpu_custom_call.1} parent=1 // pred_check_branch
      %54 = sbr.rel (0) target = $region25
    $region24: #{tpu_custom_call.1} parent=1 // pred_region
      %55 = dma.done [#allocation6], 512
    $region25: #{tpu_custom_call.1} parent=1 // pred_fallthru
      _
    %v56 = vld [vmem:[#allocation2] sm:$0xff]
    %v57 = vld [vmem:[#allocation2 + $0x8] sm:$0xff]
    %v58 = vld [vmem:[#allocation2 + $0x10] sm:$0xff]
    %v59 = vld [vmem:[#allocation2 + $0x18] sm:$0xff]
    %v60 = vld [vmem:[#allocation5] sm:$0xff]
    %v61 = vld [vmem:[#allocation5 + $0x8] sm:$0xff]
    %v62 = vld [vmem:[#allocation5 + $0x10] sm:$0xff]
    %v63 = vld [vmem:[#allocation5 + $0x18] sm:$0xff]
    %v64 = vld [vmem:[#allocation5 + $0x20] sm:$0xff]
    %v65 = vld [vmem:[#allocation5 + $0x28] sm:$0xff]
    %v66 = vld [vmem:[#allocation7] sm:$0xff]
    %v67 = vld [vmem:[#allocation7 + $0x8] sm:$0xff]
    %v68 = vld [vmem:[#allocation7 + $0x10] sm:$0xff]
    %v69 = vld [vmem:[#allocation7 + $0x18] sm:$0xff]
    %vm70 = vcmask 392192
    %v72 = vsel %vm70, %v56, 0
    %v75 = vsel %vm70, %v57, 0
    %v78 = vsel %vm70, %v58, 0
    %v81 = vsel %vm70, %v59, 0
    %83 = vmatprep.subr.mxu0 0.0
    %84 = vmatpush1.msra.mxu0 %v60
    %85 = vmatprep.subr.mxu0 0.0
    %86 = vmatpush1.msra.mxu0 %v61
    %87 = vmatprep.subr.mxu0 0.0
    %88 = vmatpush1.msra.mxu0 %v62
    %89 = vmatprep.subr.mxu0 0.0
    %90 = vmatpush1.msra.mxu0 %v63
    %91 = vmatprep.subr.mxu0 0.0
    %92 = vmatpush1.msra.mxu0 %v64
    %93 = vmatprep.subr.mxu0 0.0
    %94 = vmatpush1.msra.mxu0 %v65
    %95 = vmatprep.subr.mxu0 0.0
    %96 = vmatpush1.msra.mxu0 0.0
    %97 = vmatprep.subr.mxu0 0.0
    %98 = vmatpush1.msra.mxu0 0.0
    %99 = vmatprep.subr.mxu0 0.0
    %100 = vmatpush1.msra.mxu0 0.0
    %101 = vmatprep.subr.mxu0 0.0
    %102 = vmatpush1.msra.mxu0 0.0
    %103 = vmatprep.subr.mxu0 0.0
    %104 = vmatpush1.msra.mxu0 0.0
    %105 = vmatprep.subr.mxu0 0.0
    %106 = vmatpush1.msra.mxu0 0.0
    %107 = vmatprep.subr.mxu0 0.0
    %108 = vmatpush1.msra.mxu0 0.0
    %109 = vmatprep.subr.mxu0 0.0
    %110 = vmatpush1.msra.mxu0 0.0
    %111 = vmatprep.subr.mxu0 0.0
    %112 = vmatpush1.msra.mxu0 0.0
    %113 = vmatprep.subr.mxu0 0.0
    %114 = vmatpush1.msra.mxu0 0.0
    %115 = vmatprep.subr.mxu0 0.0
    %116 = vmatpush1.msra.mxu0 0.0
    %117 = vmatprep.subr.mxu0 0.0
    %118 = vmatpush1.msra.mxu0 0.0
    %119 = vmatprep.subr.mxu0 0.0
    %120 = vmatpush1.msra.mxu0 0.0
    %121 = vmatprep.subr.mxu0 0.0
    %122 = vmatpush1.msra.mxu0 0.0
    %123 = vmatprep.subr.mxu0 0.0
    %124 = vmatpush1.msra.mxu0 0.0
    %125 = vmatprep.subr.mxu0 0.0
    %126 = vmatpush1.msra.mxu0 0.0
    %127 = vmatprep.subr.mxu0 0.0
    %128 = vmatpush1.msra.mxu0 0.0
    %129 = vmatprep.subr.mxu0 0.0
    %130 = vmatpush1.msra.mxu0 0.0
    %131 = vmatprep.subr.mxu0 0.0
    %132 = vmatpush1.msra.mxu0 0.0
    %133 = vmatprep.subr.mxu0 0.0
    %134 = vmatpush1.msra.mxu0 0.0
    %135 = vmatprep.subr.mxu0 0.0
    %136 = vmatpush1.msra.mxu0 0.0
    %137 = vmatprep.subr.mxu0 0.0
    %138 = vmatpush1.msra.mxu0 0.0
    %139 = vmatprep.subr.mxu0 0.0
    %140 = vmatpush1.msra.mxu0 0.0
    %141 = vmatprep.subr.mxu0 0.0
    %142 = vmatpush1.msra.mxu0 0.0
    %143 = vmatprep.subr.mxu0 0.0
    %144 = vmatpush1.msra.mxu0 0.0
    %145 = vmatprep.subr.mxu0 0.0
    %146 = vmatpush1.msra.mxu0 0.0
    %147 = vmatprep.mubr.f32.mxu0 0.0
    %148 = vmatmul.mubr.f32.gmra.mrb[0].mxu0 %v72
    %v149 = vpop.f32.mrb[0].mxu0
    %v150 = vadd.f32 %v66, %v149
    %v151 = vpop.f32.mrb[0].mxu0
    %152 = vmatprep.mubr.f32.mxu0 0.0
    %153 = vmatmul.mubr.f32.gmra.mrb[0].mxu0 %v75
    %v154 = vpop.f32.mrb[0].mxu0
    %v155 = vadd.f32 %v67, %v154
    %v156 = vpop.f32.mrb[0].mxu0
    %157 = vmatprep.mubr.f32.mxu0 0.0
    %158 = vmatmul.mubr.f32.gmra.mrb[0].mxu0 %v78
    %v159 = vpop.f32.mrb[0].mxu0
    %v160 = vadd.f32 %v68, %v159
    %v161 = vpop.f32.mrb[0].mxu0
    %162 = vmatprep.mubr.f32.mxu0 0.0
    %163 = vmatmul.mubr.f32.gmra.mrb[0].mxu0 %v81
    %v164 = vpop.f32.mrb[0].mxu0
    %v165 = vadd.f32 %v69, %v164
    %v166 = vpop.f32.mrb[0].mxu0
    %167 = vdwg.mxu0
    %168 = vst [vmem:[#allocation8] sm:$0xff] %v150
    %169 = vst [vmem:[#allocation8 + $0x8] sm:$0xff] %v155
    %170 = vst [vmem:[#allocation8 + $0x10] sm:$0xff] %v160
    %171 = vst [vmem:[#allocation8 + $0x18] sm:$0xff] %v165
    // Predicated region
    $region26: #{tpu_custom_call.1} parent=1 // pred_check
      _
    $region27: #{tpu_custom_call.1} parent=1 // pred_check_branch
      %173 = sbr.rel (0) target = $region29
    $region28: #{tpu_custom_call.1} parent=1 // pred_region
      %s175 = ssub.s32 512, 512
      %176 = vsyncadd [#allocation4], %s175
      %s177 = sshll.u32 [#allocation8], 4
      %s178 = int_to_ptr.vmem [resolvable:$true] %s177
      %183 = dma.vmem_to_hbm [thread:$0]  %s178, 512, %s3, [#allocation4], 128, 128, 8
    $region29: #{tpu_custom_call.1} parent=1 // pred_fallthru
      _
    // Predicated region
    $region30: #{tpu_custom_call.1} parent=1 // pred_check
      _
    $region31: #{tpu_custom_call.1} parent=1 // pred_check_branch
      %185 = sbr.rel (0) target = $region33
    $region32: #{tpu_custom_call.1} parent=1 // pred_region
      %186 = dma.done [#allocation4], 512
    $region33: #{tpu_custom_call.1} parent=1 // pred_fallthru
      _
    %187 = vsyncpa [#allocation3], 1
    %188 = vsyncpa [#allocation6], 1
    %189 = vsyncpa [#allocation4], 1

</llo_original>
